<compile_context>
chip_gen: v6e
topology: v6e:2x2x1
jax: 0.10.0
libtpu: 0.0.40
codegen_flags: <defaults>
</compile_context>

<pallas_src>
import functools
from typing import NamedTuple

import jax
import jax.numpy as jnp
from jax.experimental import pallas as pl
from jax.experimental.pallas import tpu as pltpu

LANES = 128  # TPU vreg lane width

_VMEM = pl.BlockSpec(memory_space=pltpu.MemorySpace.VMEM)


class _Layout(NamedTuple):
    """Static row offsets of each parameter section inside the packed slab."""
    w1: int
    b1: int
    wih: int
    whh: int
    bg: int
    bhn: int
    w2: int
    b2: int
    rows: int


def _make_layout(input_dim: int, hidden_dim: int) -> _Layout:
    def up8(n):
        return ((n + 7) // 8) * 8
    r_in = up8(input_dim)
    r_h = up8(hidden_dim)
    w1 = 0
    b1 = w1 + r_in
    wih = b1 + 8
    whh = wih + r_h
    bg = whh + r_h
    bhn = bg + 8
    w2 = bhn + 8
    b2 = w2 + r_h
    rows = b2 + 8
    return _Layout(w1, b1, wih, whh, bg, bhn, w2, b2, rows)


# ----------------------------------------------------------------------------
# Shared in-kernel compute: one fc1 -> ReLU -> GRUCell -> fc2 step.
# x:     (B, input_dim)   raw observation
# h_pad: (B, 128)         hidden state, lanes [H:128) are zero
# p_ref: (rows, 384)      packed parameter slab (VMEM ref)
# returns q_pad (B, 128) [lanes >= n_outputs are 0] and h_new_pad (B, 128).
# ----------------------------------------------------------------------------
def _agent_step(x, h_pad, p_ref, *, input_dim, hidden_dim, off):
    L = LANES
    IN, H = input_dim, hidden_dim
    f32 = jnp.float32

    # fc1 + ReLU   (result lanes [H:128) are exactly 0: padded weight cols/bias are 0)
    w1 = p_ref[off.w1:off.w1 + IN, :L]            # (IN, 128)
    b1 = p_ref[off.b1:off.b1 + 1, :L]             # (1, 128)
    x1 = jnp.maximum(jnp.dot(x, w1, preferred_element_type=f32) + b1, 0.0)   # (B, 128)

    # GRUCell: two fused (B,H) x (H, 3*128) matmuls; gates gate-major, 128 lanes each.
    wih = p_ref[off.wih:off.wih + H, :]           # (H, 384)
    whh = p_ref[off.whh:off.whh + H, :]           # (H, 384)
    bg = p_ref[off.bg:off.bg + 1, :]              # (1, 384) = [b_ir+b_hr | b_iz+b_hz | b_in]
    bhn = p_ref[off.bhn:off.bhn + 1, :L]          # (1, 128) = b_hn (stays inside r*(...))

    gi = jnp.dot(x1[:, :H], wih, preferred_element_type=f32) + bg     # (B, 384)
    gh = jnp.dot(h_pad[:, :H], whh, preferred_element_type=f32)       # (B, 384)

    rz = jax.nn.sigmoid(gi[:, :2 * L] + gh[:, :2 * L])                # (B, 256)
    r = rz[:, :L]                                                     # vreg-aligned splits
    z = rz[:, L:]
    n = jnp.tanh(gi[:, 2 * L:] + r * (gh[:, 2 * L:] + bhn))           # (B, 128)
    # padded lanes: r=z=0.5, n=0, h_pad=0  ->  h_new stays 0 there.
    h_new = (1.0 - z) * n + z * h_pad                                 # (B, 128)

    # fc2 (q lanes [n_outputs:128) are 0: padded weight cols/bias are 0)
    w2 = p_ref[off.w2:off.w2 + H, :L]             # (H, 128)
    b2 = p_ref[off.b2:off.b2 + 1, :L]             # (1, 128)
    q = jnp.dot(h_new[:, :H], w2, preferred_element_type=f32) + b2    # (B, 128)
    return q, h_new


def _step_kernel(x_ref, h_ref, p_ref, q_ref, h_out_ref, *, input_dim, hidden_dim, off):
    q, h_new = _agent_step(x_ref[...], h_ref[...], p_ref,
                           input_dim=input_dim, hidden_dim=hidden_dim, off=off)
    q_ref[...] = q          # unmasked lane-dense (B, 128) store
    h_out_ref[...] = h_new  # unmasked lane-dense (B, 128) store


def _rollout_kernel(x_ref, h0_ref, p_ref, q_ref, h_ref, *, input_dim, hidden_dim, off):
    # grid = (T,); params + h0 are VMEM-resident (constant index_map); h_ref is the
    # resident recurrent-state accumulator (constant index_map, axis "arbitrary").
    t = pl.program_id(0)

    @pl.when(t == 0)
    def _():
        h_ref[...] = h0_ref[...]

    q, h_new = _agent_step(x_ref[0], h_ref[...], p_ref,
                           input_dim=input_dim, hidden_dim=hidden_dim, off=off)
    q_ref[0] = q
    h_ref[...] = h_new


class AgentModelTPU:
    """Pallas-TPU implementation of the PyTorch AgentModel forward pass."""

    def __init__(self, input_dim, hidden_dim, n_outputs):
        assert hidden_dim <= LANES and n_outputs <= LANES, "pad layout assumes <= 128"
        self.input_dim = input_dim
        self.hidden_dim = hidden_dim
        self.n_outputs = n_outputs
        self.layout = _make_layout(input_dim, hidden_dim)

        step_kernel = functools.partial(
            _step_kernel, input_dim=input_dim, hidden_dim=hidden_dim, off=self.layout)
        roll_kernel = functools.partial(
            _rollout_kernel, input_dim=input_dim, hidden_dim=hidden_dim, off=self.layout)

        self._forward = jax.jit(self._build_forward(step_kernel))
        self._rollout = jax.jit(self._build_rollout(roll_kernel))

    # ------------------------------------------------------------------ params
    def pack_params(self, params):
        """One-time host-side packing of PyTorch-layout params into one f32 slab."""
        IN, H, O, L = self.input_dim, self.hidden_dim, self.n_outputs, LANES
        off = self.layout
        slab = jnp.zeros((off.rows, 3 * L), jnp.float32)

        w1 = jnp.asarray(params["w1"], jnp.float32)          # (H, IN)
        slab = slab.at[off.w1:off.w1 + IN, :H].set(w1.T)
        slab = slab.at[off.b1, :H].set(jnp.asarray(params["b1"], jnp.float32))

        w_ih = jnp.asarray(params["w_ih"], jnp.float32)      # (3H, H), gate order r,z,n
        w_hh = jnp.asarray(params["w_hh"], jnp.float32)
        b_ih = jnp.asarray(params["b_ih"], jnp.float32)
        b_hh = jnp.asarray(params["b_hh"], jnp.float32)
        for g in range(3):                                   # gate-major, 128 lanes each
            slab = slab.at[off.wih:off.wih + H, g * L:g * L + H].set(
                w_ih[g * H:(g + 1) * H, :].T)
            slab = slab.at[off.whh:off.whh + H, g * L:g * L + H].set(
                w_hh[g * H:(g + 1) * H, :].T)
        slab = slab.at[off.bg, 0:H].set(b_ih[0:H] + b_hh[0:H])                 # r: pre-summed
        slab = slab.at[off.bg, L:L + H].set(b_ih[H:2 * H] + b_hh[H:2 * H])     # z: pre-summed
        slab = slab.at[off.bg, 2 * L:2 * L + H].set(b_ih[2 * H:3 * H])         # n: input bias
        slab = slab.at[off.bhn, 0:H].set(b_hh[2 * H:3 * H])                    # n: hidden bias

        w2 = jnp.asarray(params["w2"], jnp.float32)          # (O, H)
        slab = slab.at[off.w2:off.w2 + H, :O].set(w2.T)
        slab = slab.at[off.b2, :O].set(jnp.asarray(params["b2"], jnp.float32))
        return slab

    def init_hidden(self, batch=1):
        return jnp.zeros((batch, self.hidden_dim), jnp.float32)

    # ---------------------------------------------------------------- wrappers
    def _pad_hidden(self, hidden_state, batch):
        h = hidden_state.reshape(-1, self.hidden_dim).astype(jnp.float32)
        if h.shape[0] != batch:
            h = jnp.broadcast_to(h, (batch, self.hidden_dim))
        return jnp.pad(h, ((0, 0), (0, LANES - self.hidden_dim)))

    def _build_forward(self, step_kernel):
        H, O = self.hidden_dim, self.n_outputs

        def fwd(inputs, hidden_state, slab):
            inputs = inputs.astype(jnp.float32)
            B = inputs.shape[0]
            h_pad = self._pad_hidden(hidden_state, B)
            q_pad, h_out = pl.pallas_call(
                step_kernel,
                out_shape=(jax.ShapeDtypeStruct((B, LANES), jnp.float32),
                           jax.ShapeDtypeStruct((B, LANES), jnp.float32)),
                in_specs=[_VMEM, _VMEM, _VMEM],
                out_specs=(_VMEM, _VMEM),
                # reuse the padded-h buffer for the new hidden state (same shape/dtype)
                input_output_aliases={1: 1},
            )(inputs, h_pad, slab)
            return q_pad[:, :O], h_out[:, :H]

        return fwd

    def _build_rollout(self, roll_kernel):
        IN, H, O = self.input_dim, self.hidden_dim, self.n_outputs
        off = self.layout

        def roll(xs, hidden_state, slab):
            xs = xs.astype(jnp.float32)
            T, B, _ = xs.shape
            h_pad = self._pad_hidden(hidden_state, B)
            qs_pad, h_out = pl.pallas_call(
                roll_kernel,
                grid=(T,),
                in_specs=[
                    pl.BlockSpec((1, B, IN), lambda t: (t, 0, 0)),        # stream obs
                    pl.BlockSpec((B, LANES), lambda t: (0, 0)),           # h0 resident
                    pl.BlockSpec((off.rows, 3 * LANES), lambda t: (0, 0)),  # weights resident
                ],
                out_specs=(
                    pl.BlockSpec((1, B, LANES), lambda t: (t, 0, 0)),     # stream q
                    pl.BlockSpec((B, LANES), lambda t: (0, 0)),           # resident h state
                ),
                out_shape=(jax.ShapeDtypeStruct((T, B, LANES), jnp.float32),
                           jax.ShapeDtypeStruct((B, LANES), jnp.float32)),
                compiler_params=pltpu.CompilerParams(
                    dimension_semantics=("arbitrary",)),  # sequential recurrence
            )(xs, h_pad, slab)
            return qs_pad[:, :, :O], h_out[:, :H]

        return roll

    def forward(self, inputs, hidden_state, slab):
        return self._forward(inputs, hidden_state, slab)

    def rollout(self, xs, hidden_state, slab):
        return self._rollout(xs, hidden_state, slab)


# -------------------------------------------------------------------- reference
def init_params(key, input_dim, hidden_dim, n_outputs):
    """Deterministic synthetic parameters with PyTorch layouts."""
    ks = jax.random.split(key, 8)

    def u(k, shape, scale):
        return jax.random.uniform(k, shape, jnp.float32, -scale, scale)

    si = 1.0 / jnp.sqrt(input_dim)
    sh = 1.0 / jnp.sqrt(hidden_dim)
    return {
        "w1": u(ks[0], (hidden_dim, input_dim), si),
        "b1": u(ks[1], (hidden_dim,), si),
        "w_ih": u(ks[2], (3 * hidden_dim, hidden_dim), sh),
        "w_hh": u(ks[3], (3 * hidden_dim, hidden_dim), sh),
        "b_ih": u(ks[4], (3 * hidden_dim,), sh),
        "b_hh": u(ks[5], (3 * hidden_dim,), sh),
        "w2": u(ks[6], (n_outputs, hidden_dim), sh),
        "b2": u(ks[7], (n_outputs,), sh),
    }


def reference_forward(inputs, hidden_state, params):
    """Pure-JAX reference mirroring the PyTorch module (fc1->ReLU->GRUCell->fc2)."""
    H = params["w1"].shape[0]
    hp = jax.lax.Precision.HIGHEST
    x = jnp.maximum(jnp.dot(inputs, params["w1"].T, precision=hp) + params["b1"], 0.0)
    h = hidden_state.reshape(-1, H)
    gi = jnp.dot(x, params["w_ih"].T, precision=hp) + params["b_ih"]
    gh = jnp.dot(h, params["w_hh"].T, precision=hp) + params["b_hh"]
    r = jax.nn.sigmoid(gi[:, :H] + gh[:, :H])
    z = jax.nn.sigmoid(gi[:, H:2 * H] + gh[:, H:2 * H])
    n = jnp.tanh(gi[:, 2 * H:] + r * gh[:, 2 * H:])
    h_new = (1.0 - z) * n + z * h
    q = jnp.dot(h_new, params["w2"].T, precision=hp) + params["b2"]
    return q, h_new


if __name__ == "__main__":
    B, INPUT_DIM, HIDDEN, N_OUT, T = 8, 40, 32, 16, 6

    key = jax.random.PRNGKey(0)
    k_in, k_h, k_seq, k_p = jax.random.split(key, 4)
    inputs = jax.random.normal(k_in, (B, INPUT_DIM), jnp.float32)
    hidden = jax.random.normal(k_h, (B, HIDDEN), jnp.float32)
    xs = jax.random.normal(k_seq, (T, B, INPUT_DIM), jnp.float32)
    params = init_params(k_p, INPUT_DIM, HIDDEN, N_OUT)

    model = AgentModelTPU(INPUT_DIM, HIDDEN, N_OUT)
    slab = jax.block_until_ready(model.pack_params(params))  # one-time param packing

    # --- single step (matches the PyTorch module forward) ---
    q, h_new = model.forward(inputs, hidden, slab)
    q, h_new = jax.block_until_ready((q, h_new))
    q_ref, h_ref = reference_forward(inputs, hidden, params)
    assert jnp.allclose(q, q_ref, atol=1e-4, rtol=1e-4)
    assert jnp.allclose(h_new, h_ref, atol=1e-4, rtol=1e-4)

    # --- T-step recurrent rollout folded into grid=(T,) ---
    qs, h_last = model.rollout(xs, hidden, slab)
    qs, h_last = jax.block_until_ready((qs, h_last))
    h_r = hidden
    qs_ref = []
    for t in range(T):
        q_t, h_r = reference_forward(xs[t], h_r, params)
        qs_ref.append(q_t)
    qs_ref = jnp.stack(qs_ref)
    assert jnp.allclose(qs, qs_ref, atol=1e-4, rtol=1e-4)
    assert jnp.allclose(h_last, h_r, atol=1e-4, rtol=1e-4)

    print("KERNEL_OK")
</pallas_src>

<mosaic_0001>
module attributes {stable_mosaic.version = 11 : i64} {
  func.func @_step_kernel(%arg0: memref<8x40xf32, #tpu.memory_space<vmem>>, %arg1: memref<8x128xf32, #tpu.memory_space<vmem>>, %arg2: memref<168x384xf32, #tpu.memory_space<vmem>>, %arg3: memref<8x128xf32, #tpu.memory_space<vmem>>, %arg4: memref<8x128xf32, #tpu.memory_space<vmem>>) attributes {dimension_semantics = [], scalar_prefetch = 0 : i64, scratch_operands = 0 : i64, tpu.core_type = #tpu.core_type<tc>} {
    %c0 = arith.constant 0 : index
    %c0_0 = arith.constant 0 : index
    %0 = vector.load %arg0[%c0, %c0_0] : memref<8x40xf32, #tpu.memory_space<vmem>>, vector<8x40xf32>
    %c0_1 = arith.constant 0 : index
    %c0_2 = arith.constant 0 : index
    %1 = vector.load %arg1[%c0_1, %c0_2] : memref<8x128xf32, #tpu.memory_space<vmem>>, vector<8x128xf32>
    %c0_3 = arith.constant 0 : index
    %c0_4 = arith.constant 0 : index
    %2 = vector.load %arg2[%c0_3, %c0_4] : memref<168x384xf32, #tpu.memory_space<vmem>>, vector<40x128xf32>
    %c40 = arith.constant 40 : index
    %c0_5 = arith.constant 0 : index
    %3 = vector.load %arg2[%c40, %c0_5] : memref<168x384xf32, #tpu.memory_space<vmem>>, vector<1x128xf32>
    %cst = arith.constant dense<0.000000e+00> : vector<8x128xf32>
    %4 = tpu.matmul %0, %2, %cst {dimension_numbers = #tpu.dot_dimension_numbers<[1], [0], [0], [1], [0, 0, 1, 1], [], []>} : vector<8x40xf32>, vector<40x128xf32>, vector<8x128xf32> -> vector<8x128xf32>
    %5 = vector.broadcast %3 : vector<1x128xf32> to vector<8x128xf32>
    %6 = arith.addf %4, %5 : vector<8x128xf32>
    %cst_6 = arith.constant 0.000000e+00 : f32
    %7 = vector.broadcast %cst_6 : f32 to vector<8x128xf32>
    %8 = arith.maximumf %6, %7 : vector<8x128xf32>
    %c48 = arith.constant 48 : index
    %c0_7 = arith.constant 0 : index
    %9 = vector.load %arg2[%c48, %c0_7] : memref<168x384xf32, #tpu.memory_space<vmem>>, vector<32x384xf32>
    %c80 = arith.constant 80 : index
    %c0_8 = arith.constant 0 : index
    %10 = vector.load %arg2[%c80, %c0_8] : memref<168x384xf32, #tpu.memory_space<vmem>>, vector<32x384xf32>
    %c112 = arith.constant 112 : index
    %c0_9 = arith.constant 0 : index
    %11 = vector.load %arg2[%c112, %c0_9] : memref<168x384xf32, #tpu.memory_space<vmem>>, vector<1x384xf32>
    %c120 = arith.constant 120 : index
    %c0_10 = arith.constant 0 : index
    %12 = vector.load %arg2[%c120, %c0_10] : memref<168x384xf32, #tpu.memory_space<vmem>>, vector<1x128xf32>
    %13 = vector.extract_strided_slice %8 {offsets = [0, 0], sizes = [8, 32], strides = [1, 1]} : vector<8x128xf32> to vector<8x32xf32>
    %cst_11 = arith.constant dense<0.000000e+00> : vector<8x384xf32>
    %14 = tpu.matmul %13, %9, %cst_11 {dimension_numbers = #tpu.dot_dimension_numbers<[1], [0], [0], [1], [0, 0, 1, 1], [], []>} : vector<8x32xf32>, vector<32x384xf32>, vector<8x384xf32> -> vector<8x384xf32>
    %15 = vector.broadcast %11 : vector<1x384xf32> to vector<8x384xf32>
    %16 = arith.addf %14, %15 : vector<8x384xf32>
    %17 = vector.extract_strided_slice %1 {offsets = [0, 0], sizes = [8, 32], strides = [1, 1]} : vector<8x128xf32> to vector<8x32xf32>
    %cst_12 = arith.constant dense<0.000000e+00> : vector<8x384xf32>
    %18 = tpu.matmul %17, %10, %cst_12 {dimension_numbers = #tpu.dot_dimension_numbers<[1], [0], [0], [1], [0, 0, 1, 1], [], []>} : vector<8x32xf32>, vector<32x384xf32>, vector<8x384xf32> -> vector<8x384xf32>
    %19 = vector.extract_strided_slice %16 {offsets = [0, 0], sizes = [8, 256], strides = [1, 1]} : vector<8x384xf32> to vector<8x256xf32>
    %20 = vector.extract_strided_slice %18 {offsets = [0, 0], sizes = [8, 256], strides = [1, 1]} : vector<8x384xf32> to vector<8x256xf32>
    %21 = arith.addf %19, %20 : vector<8x256xf32>
    %22 = arith.negf %21 : vector<8x256xf32>
    %23 = math.exp %22 : vector<8x256xf32>
    %cst_13 = arith.constant 1.000000e+00 : f32
    %24 = vector.broadcast %cst_13 : f32 to vector<8x256xf32>
    %25 = arith.addf %24, %23 : vector<8x256xf32>
    %26 = arith.divf %24, %25 : vector<8x256xf32>
    %27 = vector.extract_strided_slice %26 {offsets = [0, 0], sizes = [8, 128], strides = [1, 1]} : vector<8x256xf32> to vector<8x128xf32>
    %28 = vector.extract_strided_slice %26 {offsets = [0, 128], sizes = [8, 128], strides = [1, 1]} : vector<8x256xf32> to vector<8x128xf32>
    %29 = vector.extract_strided_slice %16 {offsets = [0, 256], sizes = [8, 128], strides = [1, 1]} : vector<8x384xf32> to vector<8x128xf32>
    %30 = vector.extract_strided_slice %18 {offsets = [0, 256], sizes = [8, 128], strides = [1, 1]} : vector<8x384xf32> to vector<8x128xf32>
    %31 = vector.broadcast %12 : vector<1x128xf32> to vector<8x128xf32>
    %32 = arith.addf %30, %31 : vector<8x128xf32>
    %33 = arith.mulf %27, %32 : vector<8x128xf32>
    %34 = arith.addf %29, %33 : vector<8x128xf32>
    %35 = math.tanh %34 : vector<8x128xf32>
    %cst_14 = arith.constant 1.000000e+00 : f32
    %36 = vector.broadcast %cst_14 : f32 to vector<8x128xf32>
    %37 = arith.subf %36, %28 : vector<8x128xf32>
    %38 = arith.mulf %37, %35 : vector<8x128xf32>
    %39 = arith.mulf %28, %1 : vector<8x128xf32>
    %40 = arith.addf %38, %39 : vector<8x128xf32>
    %c128 = arith.constant 128 : index
    %c0_15 = arith.constant 0 : index
    %41 = vector.load %arg2[%c128, %c0_15] : memref<168x384xf32, #tpu.memory_space<vmem>>, vector<32x128xf32>
    %c160 = arith.constant 160 : index
    %c0_16 = arith.constant 0 : index
    %42 = vector.load %arg2[%c160, %c0_16] : memref<168x384xf32, #tpu.memory_space<vmem>>, vector<1x128xf32>
    %43 = vector.extract_strided_slice %40 {offsets = [0, 0], sizes = [8, 32], strides = [1, 1]} : vector<8x128xf32> to vector<8x32xf32>
    %cst_17 = arith.constant dense<0.000000e+00> : vector<8x128xf32>
    %44 = tpu.matmul %43, %41, %cst_17 {dimension_numbers = #tpu.dot_dimension_numbers<[1], [0], [0], [1], [0, 0, 1, 1], [], []>} : vector<8x32xf32>, vector<32x128xf32>, vector<8x128xf32> -> vector<8x128xf32>
    %45 = vector.broadcast %42 : vector<1x128xf32> to vector<8x128xf32>
    %46 = arith.addf %44, %45 : vector<8x128xf32>
    %c0_18 = arith.constant 0 : index
    %c0_19 = arith.constant 0 : index
    %47 = vector.load %arg3[%c0_18, %c0_19] : memref<8x128xf32, #tpu.memory_space<vmem>>, vector<8x128xf32>
    tpu.vector_store %arg3[%c0_18, %c0_19], %46 {strides = array<i32>} : memref<8x128xf32, #tpu.memory_space<vmem>>, vector<8x128xf32>,
    %c0_20 = arith.constant 0 : index
    %c0_21 = arith.constant 0 : index
    %48 = vector.load %arg4[%c0_20, %c0_21] : memref<8x128xf32, #tpu.memory_space<vmem>>, vector<8x128xf32>
    tpu.vector_store %arg4[%c0_20, %c0_21], %40 {strides = array<i32>} : memref<8x128xf32, #tpu.memory_space<vmem>>, vector<8x128xf32>,
    return
  }
}

</mosaic_0001>

<llo_original>
// kernel: fwd.1
$region0: #{fwd.1}
  #allocation0 [shape = 'u32[]', space=smem, size = 0x4, offset = 0x4, fixed_abs, tag = 'smem constant byte address 0x4 - core index']
  #allocation1 [shape = 'u32[144,128]{1,0:T(1,128)}', space=vmem, size = 0x12000, scoped, tag = 'internal scratch']
  %s0 = inlined_call_operand.vmem [shape: f32[8,40], index: 0, kind: input, shape index: {}]
  %s1 = inlined_call_operand.vmem [shape: f32[8,128], index: 1, kind: input, shape index: {}, may-alias: {1,4}]
  %s2 = inlined_call_operand.hbm [shape: f32[168,384], index: 2, kind: input, shape index: {}]
  %s3 = inlined_call_operand.hbm [shape: f32[8,128], index: 3, kind: output, shape index: {0}]
  %s4 = inlined_call_operand.vmem [shape: f32[8,128], index: 4, kind: output, shape index: {1}, may-alias: {1,4}]
  %5 = xla_tuple %s3, %s4
  %s6 = sld [smem:[#allocation0]]
  $region34: #{fwd.1} parent=0
    _
  %s8 = ssub.s32 1, %s6
  %s9 = scalar_select 0, %s8, %s6
  $region1: #{fwd.1} parent=0
    #allocation2 [shape = 'u8[258048]{0}', space=vmem, size = 0x3f000, scoped, tag = 'input window, operand 2, single buffered']
    #allocation3 [shape = 's32[1]{0}', space=sflag, size = 0x4, scoped, tag = 'scoped memory for fwd.1']
    #allocation4 [shape = 's32[1]{0}', space=sflag, size = 0x4, scoped, tag = 'scoped memory for fwd.1']
    #allocation5 [shape = 'u8[4096]{0}', space=vmem, size = 0x1000, scoped, tag = 'output window, operand 0, single buffered']
    %10 = vsyncpa [#allocation3], 0
    %11 = vsyncpa [#allocation4], 0
    // Predicated region
    $region2: #{fwd.1} parent=1 // pred_check
      _
    $region3: #{fwd.1} parent=1 // pred_check_branch
      %13 = sbr.rel (0) target = $region5
    $region4: #{fwd.1} parent=1 // pred_region
      _
    $region5: #{fwd.1} parent=1 // pred_fallthru
      _
    // Predicated region
    $region6: #{fwd.1} parent=1 // pred_check
      _
    $region7: #{fwd.1} parent=1 // pred_check_branch
      %15 = sbr.rel (0) target = $region9
    $region8: #{fwd.1} parent=1 // pred_region
      _
    $region9: #{fwd.1} parent=1 // pred_fallthru
      _
    // Predicated region
    $region10: #{fwd.1} parent=1 // pred_check
      _
    $region11: #{fwd.1} parent=1 // pred_check_branch
      %17 = sbr.rel (0) target = $region13
    $region12: #{fwd.1} parent=1 // pred_region
      %s19 = ssub.s32 8064, 8064
      %20 = vsyncadd [#allocation3], %s19
      %s21 = sshll.u32 [#allocation2], 4
      %s22 = int_to_ptr.vmem [resolvable:$true] %s21
      %27 = dma.hbm_to_vmem [thread:$0]  %s2, 8064, %s22, [#allocation3], 384, 384, 24
    $region13: #{fwd.1} parent=1 // pred_fallthru
      _
    // Predicated region
    $region14: #{fwd.1} parent=1 // pred_check
      _
    $region15: #{fwd.1} parent=1 // pred_check_branch
      %29 = sbr.rel (0) target = $region17
    $region16: #{fwd.1} parent=1 // pred_region
      %30 = dma.done [#allocation3], 8064
    $region17: #{fwd.1} parent=1 // pred_fallthru
      _
    %v31 = vld [vmem:[%s0] sm:$0xff]
    %v32 = vld [vmem:[%s1] sm:$0xff]
    %v33 = vld [vmem:[#allocation2] sm:$0xff]
    %v34 = vld [vmem:[#allocation2 + $0x18] sm:$0xff]
    %v35 = vld [vmem:[#allocation2 + $0x30] sm:$0xff]
    %v36 = vld [vmem:[#allocation2 + $0x48] sm:$0xff]
    %v37 = vld [vmem:[#allocation2 + $0x60] sm:$0xff]
    %v38 = vld [vmem:[#allocation2 + $0x78] ss:$0 sm:$0xff]
    %vm39 = vcmask 326656
    %v41 = vsel %vm39, %v31, 0
    %43 = vmatprep.subr.mxu0 0.0
    %44 = vmatpush1.msra.mxu0 0.0
    %45 = vmatprep.subr.mxu0 0.0
    %46 = vmatpush1.msra.mxu0 0.0
    %47 = vmatprep.subr.mxu0 0.0
    %48 = vmatpush1.msra.mxu0 0.0
    %49 = vmatprep.subr.mxu0 0.0
    %50 = vmatpush1.msra.mxu0 0.0
    %51 = vmatprep.subr.mxu0 0.0
    %52 = vmatpush1.msra.mxu0 0.0
    %53 = vmatprep.subr.mxu0 0.0
    %54 = vmatpush1.msra.mxu0 0.0
    %55 = vmatprep.subr.mxu0 0.0
    %56 = vmatpush1.msra.mxu0 0.0
    %57 = vmatprep.subr.mxu0 0.0
    %58 = vmatpush1.msra.mxu0 0.0
    %59 = vmatprep.subr.mxu0 0.0
    %60 = vmatpush1.msra.mxu0 0.0
    %61 = vmatprep.subr.mxu0 0.0
    %62 = vmatpush1.msra.mxu0 0.0
    %63 = vmatprep.subr.mxu0 0.0
    %64 = vmatpush1.msra.mxu0 0.0
    %65 = vmatprep.subr.mxu0 0.0
    %66 = vmatpush1.msra.mxu0 %v37
    %67 = vmatprep.subr.mxu0 0.0
    %68 = vmatpush1.msra.mxu0 %v36
    %69 = vmatprep.subr.mxu0 0.0
    %70 = vmatpush1.msra.mxu0 %v35
    %71 = vmatprep.subr.mxu0 0.0
    %72 = vmatpush1.msra.mxu0 %v34
    %73 = vmatprep.subr.mxu0 0.0
    %74 = vmatpush1.msra.mxu0 %v33
    %75 = vmatprep.subr.mxu0 0.0
    %76 = vmatpush2.msra.mxu0 0.0
    %77 = vmatprep.subr.mxu0 0.0
    %78 = vmatpush2.msra.mxu0 0.0
    %79 = vmatprep.subr.mxu0 0.0
    %80 = vmatpush2.msra.mxu0 0.0
    %81 = vmatprep.subr.mxu0 0.0
    %82 = vmatpush2.msra.mxu0 0.0
    %83 = vmatprep.subr.mxu0 0.0
    %84 = vmatpush2.msra.mxu0 0.0
    %85 = vmatprep.subr.mxu0 0.0
    %86 = vmatpush2.msra.mxu0 0.0
    %87 = vmatprep.subr.mxu0 0.0
    %88 = vmatpush2.msra.mxu0 0.0
    %89 = vmatprep.subr.mxu0 0.0
    %90 = vmatpush2.msra.mxu0 0.0
    %91 = vmatprep.subr.mxu0 0.0
    %92 = vmatpush2.msra.mxu0 0.0
    %93 = vmatprep.subr.mxu0 0.0
    %94 = vmatpush2.msra.mxu0 0.0
    %95 = vmatprep.subr.mxu0 0.0
    %96 = vmatpush2.msra.mxu0 0.0
    %97 = vmatprep.subr.mxu0 0.0
    %98 = vmatpush2.msra.mxu0 0.0
    %99 = vmatprep.subr.mxu0 0.0
    %100 = vmatpush2.msra.mxu0 0.0
    %101 = vmatprep.subr.mxu0 0.0
    %102 = vmatpush2.msra.mxu0 0.0
    %103 = vmatprep.subr.mxu0 0.0
    %104 = vmatpush2.msra.mxu0 0.0
    %105 = vmatprep.subr.mxu0 0.0
    %106 = vmatpush2.msra.mxu0 0.0
    %107 = vmatprep.mubr.f32.mxu0 0.0
    %108 = vmatmul.mubr.f32.gmra.mxu0 %v41
    %v109 = vpop.f32.mrf.mxu0
    %v110 = vadd.f32 %v38, %v109
    %v111 = vpop.f32.mrf.mxu0
    %112 = vdwg.mxu0
    %v113 = vmax.f32 %v110, 0.0
    %v114 = vld [vmem:[#allocation2 + $0x90] sm:$0xff]
    %v115 = vld [vmem:[#allocation2 + $0x98] sm:$0xff]
    %v116 = vld [vmem:[#allocation2 + $0xa0] sm:$0xff]
    %v117 = vld [vmem:[#allocation2 + $0xa8] sm:$0xff]
    %v118 = vld [vmem:[#allocation2 + $0xb0] sm:$0xff]
    %v119 = vld [vmem:[#allocation2 + $0xb8] sm:$0xff]
    %v120 = vld [vmem:[#allocation2 + $0xc0] sm:$0xff]
    %v121 = vld [vmem:[#allocation2 + $0xc8] sm:$0xff]
    %v122 = vld [vmem:[#allocation2 + $0xd0] sm:$0xff]
    %v123 = vld [vmem:[#allocation2 + $0xd8] sm:$0xff]
    %v124 = vld [vmem:[#allocation2 + $0xe0] sm:$0xff]
    %v125 = vld [vmem:[#allocation2 + $0xe8] sm:$0xff]
    %v126 = vld [vmem:[#allocation2 + $0xf0] sm:$0xff]
    %v127 = vld [vmem:[#allocation2 + $0xf8] sm:$0xff]
    %v128 = vld [vmem:[#allocation2 + $0x100] sm:$0xff]
    %v129 = vld [vmem:[#allocation2 + $0x108] sm:$0xff]
    %v130 = vld [vmem:[#allocation2 + $0x110] sm:$0xff]
    %v131 = vld [vmem:[#allocation2 + $0x118] sm:$0xff]
    %v132 = vld [vmem:[#allocation2 + $0x120] sm:$0xff]
    %v133 = vld [vmem:[#allocation2 + $0x128] sm:$0xff]
    %v134 = vld [vmem:[#allocation2 + $0x130] sm:$0xff]
    %v135 = vld [vmem:[#allocation2 + $0x138] sm:$0xff]
    %v136 = vld [vmem:[#allocation2 + $0x140] sm:$0xff]
    %v137 = vld [vmem:[#allocation2 + $0x148] sm:$0xff]
    %s138 = scalar_lea.vmem [#allocation2], 336
    %v139 = vld [vmem:[%s138] ss:$8 sm:$0x7]
    %v140 = vld [vmem:[#allocation2 + $0x168] ss:$0 sm:$0xff]
    %v142 = vlaneseq
    %v143 = vshrl.u32 %v142, 7
    %v144 = vsub.s32 0, %v143
    %v145 = vrot.slane %v139, %v144
    %v146 = vlaneseq
    %v147 = vshrl.u32 %v146, 7
    %v148 = vsub.s32 1, %v147
    %v149 = vrot.slane %v139, %v148
    %v150 = vlaneseq
    %v151 = vshrl.u32 %v150, 7
    %v152 = vsub.s32 2, %v151
    %v153 = vrot.slane %v139, %v152
    %vm157 = vcmask 261120
    %v159 = vsel %vm157, %v113, 0
    %161 = vmatprep.subr.mxu0 0.0
    %162 = vmatpush1.msra.mxu0 0.0
    %163 = vmatprep.subr.mxu0 0.0
    %164 = vmatpush1.msra.mxu0 0.0
    %165 = vmatprep.subr.mxu0 0.0
    %166 = vmatpush1.msra.mxu0 0.0
    %167 = vmatprep.subr.mxu0 0.0
    %168 = vmatpush1.msra.mxu0 0.0
    %169 = vmatprep.subr.mxu0 0.0
    %170 = vmatpush1.msra.mxu0 0.0
    %171 = vmatprep.subr.mxu0 0.0
    %172 = vmatpush1.msra.mxu0 0.0
    %173 = vmatprep.subr.mxu0 0.0
    %174 = vmatpush1.msra.mxu0 0.0
    %175 = vmatprep.subr.mxu0 0.0
    %176 = vmatpush1.msra.mxu0 0.0
    %177 = vmatprep.subr.mxu0 0.0
    %178 = vmatpush1.msra.mxu0 0.0
    %179 = vmatprep.subr.mxu0 0.0
    %180 = vmatpush1.msra.mxu0 0.0
    %181 = vmatprep.subr.mxu0 0.0
    %182 = vmatpush1.msra.mxu0 0.0
    %183 = vmatprep.subr.mxu0 0.0
    %184 = vmatpush1.msra.mxu0 0.0
    %185 = vmatprep.subr.mxu0 %v124
    %186 = vmatpush1.msra.mxu0 %v123
    %187 = vmatprep.subr.mxu0 %v121
    %188 = vmatpush1.msra.mxu0 %v120
    %189 = vmatprep.subr.mxu0 %v118
    %190 = vmatpush1.msra.mxu0 %v117
    %191 = vmatprep.subr.mxu0 %v115
    %192 = vmatpush1.msra.mxu0 %v114
    %193 = vmatprep.subr.mxu0 0.0
    %194 = vmatpush2.msra.mxu0 0.0
    %195 = vmatprep.subr.mxu0 0.0
    %196 = vmatpush2.msra.mxu0 0.0
    %197 = vmatprep.subr.mxu0 0.0
    %198 = vmatpush2.msra.mxu0 0.0
    %199 = vmatprep.subr.mxu0 0.0
    %200 = vmatpush2.msra.mxu0 0.0
    %201 = vmatprep.subr.mxu0 0.0
    %202 = vmatpush2.msra.mxu0 0.0
    %203 = vmatprep.subr.mxu0 0.0
    %204 = vmatpush2.msra.mxu0 0.0
    %205 = vmatprep.subr.mxu0 0.0
    %206 = vmatpush2.msra.mxu0 0.0
    %207 = vmatprep.subr.mxu0 0.0
    %208 = vmatpush2.msra.mxu0 0.0
    %209 = vmatprep.subr.mxu0 0.0
    %210 = vmatpush2.msra.mxu0 0.0
    %211 = vmatprep.subr.mxu0 0.0
    %212 = vmatpush2.msra.mxu0 0.0
    %213 = vmatprep.subr.mxu0 0.0
    %214 = vmatpush2.msra.mxu0 0.0
    %215 = vmatprep.subr.mxu0 0.0
    %216 = vmatpush2.msra.mxu0 0.0
    %217 = vmatprep.subr.mxu0 0.0
    %218 = vmatpush2.msra.mxu0 0.0
    %219 = vmatprep.subr.mxu0 0.0
    %220 = vmatpush2.msra.mxu0 0.0
    %221 = vmatprep.subr.mxu0 0.0
    %222 = vmatpush2.msra.mxu0 0.0
    %223 = vmatprep.subr.mxu0 0.0
    %224 = vmatpush2.msra.mxu0 0.0
    %225 = vmatprep.mubr.f32.mxu0 0.0
    %226 = vmatmul.mubr.f32.gmra.mxu0 %v159
    %v227 = vpop.f32.mrf.mxu0
    %v228 = vadd.f32 %v145, %v227
    %v229 = vpop.f32.mrf.mxu0
    %v230 = vadd.f32 %v149, %v229
    %231 = vdwg.mxu0
    %232 = vmatprep.subr.mxu0 0.0
    %233 = vmatpush1.msra.mxu0 0.0
    %234 = vmatprep.subr.mxu0 0.0
    %235 = vmatpush1.msra.mxu0 0.0
    %236 = vmatprep.subr.mxu0 0.0
    %237 = vmatpush1.msra.mxu0 0.0
    %238 = vmatprep.subr.mxu0 0.0
    %239 = vmatpush1.msra.mxu0 0.0
    %240 = vmatprep.subr.mxu0 0.0
    %241 = vmatpush1.msra.mxu0 0.0
    %242 = vmatprep.subr.mxu0 0.0
    %243 = vmatpush1.msra.mxu0 0.0
    %244 = vmatprep.subr.mxu0 0.0
    %245 = vmatpush1.msra.mxu0 0.0
    %246 = vmatprep.subr.mxu0 0.0
    %247 = vmatpush1.msra.mxu0 0.0
    %248 = vmatprep.subr.mxu0 0.0
    %249 = vmatpush1.msra.mxu0 0.0
    %250 = vmatprep.subr.mxu0 0.0
    %251 = vmatpush1.msra.mxu0 0.0
    %252 = vmatprep.subr.mxu0 0.0
    %253 = vmatpush1.msra.mxu0 0.0
    %254 = vmatprep.subr.mxu0 0.0
    %255 = vmatpush1.msra.mxu0 0.0
    %256 = vmatprep.subr.mxu0 0.0
    %257 = vmatpush1.msra.mxu0 %v125
    %258 = vmatprep.subr.mxu0 0.0
    %259 = vmatpush1.msra.mxu0 %v122
    %260 = vmatprep.subr.mxu0 0.0
    %261 = vmatpush1.msra.mxu0 %v119
    %262 = vmatprep.subr.mxu0 0.0
    %263 = vmatpush1.msra.mxu0 %v116
    %264 = vmatprep.subr.mxu0 0.0
    %265 = vmatpush2.msra.mxu0 0.0
    %266 = vmatprep.subr.mxu0 0.0
    %267 = vmatpush2.msra.mxu0 0.0
    %268 = vmatprep.subr.mxu0 0.0
    %269 = vmatpush2.msra.mxu0 0.0
    %270 = vmatprep.subr.mxu0 0.0
    %271 = vmatpush2.msra.mxu0 0.0
    %272 = vmatprep.subr.mxu0 0.0
    %273 = vmatpush2.msra.mxu0 0.0
    %274 = vmatprep.subr.mxu0 0.0
    %275 = vmatpush2.msra.mxu0 0.0
    %276 = vmatprep.subr.mxu0 0.0
    %277 = vmatpush2.msra.mxu0 0.0
    %278 = vmatprep.subr.mxu0 0.0
    %279 = vmatpush2.msra.mxu0 0.0
    %280 = vmatprep.subr.mxu0 0.0
    %281 = vmatpush2.msra.mxu0 0.0
    %282 = vmatprep.subr.mxu0 0.0
    %283 = vmatpush2.msra.mxu0 0.0
    %284 = vmatprep.subr.mxu0 0.0
    %285 = vmatpush2.msra.mxu0 0.0
    %286 = vmatprep.subr.mxu0 0.0
    %287 = vmatpush2.msra.mxu0 0.0
    %288 = vmatprep.subr.mxu0 0.0
    %289 = vmatpush2.msra.mxu0 0.0
    %290 = vmatprep.subr.mxu0 0.0
    %291 = vmatpush2.msra.mxu0 0.0
    %292 = vmatprep.subr.mxu0 0.0
    %293 = vmatpush2.msra.mxu0 0.0
    %294 = vmatprep.subr.mxu0 0.0
    %295 = vmatpush2.msra.mxu0 0.0
    %296 = vmatprep.mubr.f32.mxu0 0.0
    %297 = vmatmul.mubr.f32.gmra.mxu0 %v159
    %v298 = vpop.f32.mrf.mxu0
    %v299 = vadd.f32 %v153, %v298
    %v300 = vpop.f32.mrf.mxu0
    %301 = vdwg.mxu0
    %v303 = vsel %vm157, %v32, 0
    %305 = vmatprep.subr.mxu0 0.0
    %306 = vmatpush1.msra.mxu0 0.0
    %307 = vmatprep.subr.mxu0 0.0
    %308 = vmatpush1.msra.mxu0 0.0
    %309 = vmatprep.subr.mxu0 0.0
    %310 = vmatpush1.msra.mxu0 0.0
    %311 = vmatprep.subr.mxu0 0.0
    %312 = vmatpush1.msra.mxu0 0.0
    %313 = vmatprep.subr.mxu0 0.0
    %314 = vmatpush1.msra.mxu0 0.0
    %315 = vmatprep.subr.mxu0 0.0
    %316 = vmatpush1.msra.mxu0 0.0
    %317 = vmatprep.subr.mxu0 0.0
    %318 = vmatpush1.msra.mxu0 0.0
    %319 = vmatprep.subr.mxu0 0.0
    %320 = vmatpush1.msra.mxu0 0.0
    %321 = vmatprep.subr.mxu0 0.0
    %322 = vmatpush1.msra.mxu0 0.0
    %323 = vmatprep.subr.mxu0 0.0
    %324 = vmatpush1.msra.mxu0 0.0
    %325 = vmatprep.subr.mxu0 0.0
    %326 = vmatpush1.msra.mxu0 0.0
    %327 = vmatprep.subr.mxu0 0.0
    %328 = vmatpush1.msra.mxu0 0.0
    %329 = vmatprep.subr.mxu0 %v136
    %330 = vmatpush1.msra.mxu0 %v135
    %331 = vmatprep.subr.mxu0 %v133
    %332 = vmatpush1.msra.mxu0 %v132
    %333 = vmatprep.subr.mxu0 %v130
    %334 = vmatpush1.msra.mxu0 %v129
    %335 = vmatprep.subr.mxu0 %v127
    %336 = vmatpush1.msra.mxu0 %v126
    %337 = vmatprep.subr.mxu0 0.0
    %338 = vmatpush2.msra.mxu0 0.0
    %339 = vmatprep.subr.mxu0 0.0
    %340 = vmatpush2.msra.mxu0 0.0
    %341 = vmatprep.subr.mxu0 0.0
    %342 = vmatpush2.msra.mxu0 0.0
    %343 = vmatprep.subr.mxu0 0.0
    %344 = vmatpush2.msra.mxu0 0.0
    %345 = vmatprep.subr.mxu0 0.0
    %346 = vmatpush2.msra.mxu0 0.0
    %347 = vmatprep.subr.mxu0 0.0
    %348 = vmatpush2.msra.mxu0 0.0
    %349 = vmatprep.subr.mxu0 0.0
    %350 = vmatpush2.msra.mxu0 0.0
    %351 = vmatprep.subr.mxu0 0.0
    %352 = vmatpush2.msra.mxu0 0.0
    %353 = vmatprep.subr.mxu0 0.0
    %354 = vmatpush2.msra.mxu0 0.0
    %355 = vmatprep.subr.mxu0 0.0
    %356 = vmatpush2.msra.mxu0 0.0
    %357 = vmatprep.subr.mxu0 0.0
    %358 = vmatpush2.msra.mxu0 0.0
    %359 = vmatprep.subr.mxu0 0.0
    %360 = vmatpush2.msra.mxu0 0.0
    %361 = vmatprep.subr.mxu0 0.0
    %362 = vmatpush2.msra.mxu0 0.0
    %363 = vmatprep.subr.mxu0 0.0
    %364 = vmatpush2.msra.mxu0 0.0
    %365 = vmatprep.subr.mxu0 0.0
    %366 = vmatpush2.msra.mxu0 0.0
    %367 = vmatprep.subr.mxu0 0.0
    %368 = vmatpush2.msra.mxu0 0.0
    %369 = vmatprep.mubr.f32.mxu0 0.0
    %370 = vmatmul.mubr.f32.gmra.mxu0 %v303
    %v371 = vpop.f32.mrf.mxu0
    %v372 = vadd.f32 0.0, %v371
    %v373 = vpop.f32.mrf.mxu0
    %v374 = vadd.f32 0.0, %v373
    %375 = vdwg.mxu0
    %376 = vmatprep.subr.mxu0 0.0
    %377 = vmatpush1.msra.mxu0 0.0
    %378 = vmatprep.subr.mxu0 0.0
    %379 = vmatpush1.msra.mxu0 0.0
    %380 = vmatprep.subr.mxu0 0.0
    %381 = vmatpush1.msra.mxu0 0.0
    %382 = vmatprep.subr.mxu0 0.0
    %383 = vmatpush1.msra.mxu0 0.0
    %384 = vmatprep.subr.mxu0 0.0
    %385 = vmatpush1.msra.mxu0 0.0
    %386 = vmatprep.subr.mxu0 0.0
    %387 = vmatpush1.msra.mxu0 0.0
    %388 = vmatprep.subr.mxu0 0.0
    %389 = vmatpush1.msra.mxu0 0.0
    %390 = vmatprep.subr.mxu0 0.0
    %391 = vmatpush1.msra.mxu0 0.0
    %392 = vmatprep.subr.mxu0 0.0
    %393 = vmatpush1.msra.mxu0 0.0
    %394 = vmatprep.subr.mxu0 0.0
    %395 = vmatpush1.msra.mxu0 0.0
    %396 = vmatprep.subr.mxu0 0.0
    %397 = vmatpush1.msra.mxu0 0.0
    %398 = vmatprep.subr.mxu0 0.0
    %399 = vmatpush1.msra.mxu0 0.0
    %400 = vmatprep.subr.mxu0 0.0
    %401 = vmatpush1.msra.mxu0 %v137
    %402 = vmatprep.subr.mxu0 0.0
    %403 = vmatpush1.msra.mxu0 %v134
    %404 = vmatprep.subr.mxu0 0.0
    %405 = vmatpush1.msra.mxu0 %v131
    %406 = vmatprep.subr.mxu0 0.0
    %407 = vmatpush1.msra.mxu0 %v128
    %408 = vmatprep.subr.mxu0 0.0
    %409 = vmatpush2.msra.mxu0 0.0
    %410 = vmatprep.subr.mxu0 0.0
    %411 = vmatpush2.msra.mxu0 0.0
    %412 = vmatprep.subr.mxu0 0.0
    %413 = vmatpush2.msra.mxu0 0.0
    %414 = vmatprep.subr.mxu0 0.0
    %415 = vmatpush2.msra.mxu0 0.0
    %416 = vmatprep.subr.mxu0 0.0
    %417 = vmatpush2.msra.mxu0 0.0
    %418 = vmatprep.subr.mxu0 0.0
    %419 = vmatpush2.msra.mxu0 0.0
    %420 = vmatprep.subr.mxu0 0.0
    %421 = vmatpush2.msra.mxu0 0.0
    %422 = vmatprep.subr.mxu0 0.0
    %423 = vmatpush2.msra.mxu0 0.0
    %424 = vmatprep.subr.mxu0 0.0
    %425 = vmatpush2.msra.mxu0 0.0
    %426 = vmatprep.subr.mxu0 0.0
    %427 = vmatpush2.msra.mxu0 0.0
    %428 = vmatprep.subr.mxu0 0.0
    %429 = vmatpush2.msra.mxu0 0.0
    %430 = vmatprep.subr.mxu0 0.0
    %431 = vmatpush2.msra.mxu0 0.0
    %432 = vmatprep.subr.mxu0 0.0
    %433 = vmatpush2.msra.mxu0 0.0
    %434 = vmatprep.subr.mxu0 0.0
    %435 = vmatpush2.msra.mxu0 0.0
    %436 = vmatprep.subr.mxu0 0.0
    %437 = vmatpush2.msra.mxu0 0.0
    %438 = vmatprep.subr.mxu0 0.0
    %439 = vmatpush2.msra.mxu0 0.0
    %440 = vmatprep.mubr.f32.mxu0 0.0
    %441 = vmatmul.mubr.f32.gmra.mxu0 %v303
    %v442 = vpop.f32.mrf.mxu0
    %v443 = vadd.f32 0.0, %v442
    %v444 = vpop.f32.mrf.mxu0
    %445 = vdwg.mxu0
    %v446 = vadd.f32 %v228, %v372
    %v447 = vadd.f32 %v230, %v374
    %v448 = vxor.u32 %v446, 2147483648
    %v449 = vxor.u32 %v447, 2147483648
    %v450 = vmul.f32 %v448, 1.442695
    %v451 = vpow.pop %v450
    %v452 = vmul.f32 %v449, 1.442695
    %v453 = vpow.pop %v452
    %v454 = vadd.f32 %v451, 1.0
    %v455 = vadd.f32 %v453, 1.0
    %v456 = vrcp.pop %v454
    %v457 = vmul.f32 1.0, %v456
    %v458 = vrcp.pop %v455
    %v459 = vmul.f32 1.0, %v458
    %v460 = vadd.f32 %v443, %v140
    %v461 = vmul.f32 %v457, %v460
    %v462 = vadd.f32 %v299, %v461
    %v463 = vtanh.pop %v462
    %v464 = vsub.f32 1.0, %v459
    %v465 = vmul.f32 %v464, %v463
    %v466 = vmul.f32 %v459, %v32
    %v467 = vadd.f32 %v465, %v466
    %v468 = vld [vmem:[#allocation2 + $0x180] sm:$0xff]
    %v469 = vld [vmem:[#allocation2 + $0x198] sm:$0xff]
    %v470 = vld [vmem:[#allocation2 + $0x1b0] sm:$0xff]
    %v471 = vld [vmem:[#allocation2 + $0x1c8] sm:$0xff]
    %v472 = vld [vmem:[#allocation2 + $0x1e0] ss:$0 sm:$0xff]
    %v474 = vsel %vm157, %v467, 0
    %476 = vmatprep.subr.mxu0 0.0
    %477 = vmatpush1.msra.mxu0 0.0
    %478 = vmatprep.subr.mxu0 0.0
    %479 = vmatpush1.msra.mxu0 0.0
    %480 = vmatprep.subr.mxu0 0.0
    %481 = vmatpush1.msra.mxu0 0.0
    %482 = vmatprep.subr.mxu0 0.0
    %483 = vmatpush1.msra.mxu0 0.0
    %484 = vmatprep.subr.mxu0 0.0
    %485 = vmatpush1.msra.mxu0 0.0
    %486 = vmatprep.subr.mxu0 0.0
    %487 = vmatpush1.msra.mxu0 0.0
    %488 = vmatprep.subr.mxu0 0.0
    %489 = vmatpush1.msra.mxu0 0.0
    %490 = vmatprep.subr.mxu0 0.0
    %491 = vmatpush1.msra.mxu0 0.0
    %492 = vmatprep.subr.mxu0 0.0
    %493 = vmatpush1.msra.mxu0 0.0
    %494 = vmatprep.subr.mxu0 0.0
    %495 = vmatpush1.msra.mxu0 0.0
    %496 = vmatprep.subr.mxu0 0.0
    %497 = vmatpush1.msra.mxu0 0.0
    %498 = vmatprep.subr.mxu0 0.0
    %499 = vmatpush1.msra.mxu0 0.0
    %500 = vmatprep.subr.mxu0 0.0
    %501 = vmatpush1.msra.mxu0 %v471
    %502 = vmatprep.subr.mxu0 0.0
    %503 = vmatpush1.msra.mxu0 %v470
    %504 = vmatprep.subr.mxu0 0.0
    %505 = vmatpush1.msra.mxu0 %v469
    %506 = vmatprep.subr.mxu0 0.0
    %507 = vmatpush1.msra.mxu0 %v468
    %508 = vmatprep.subr.mxu0 0.0
    %509 = vmatpush2.msra.mxu0 0.0
    %510 = vmatprep.subr.mxu0 0.0
    %511 = vmatpush2.msra.mxu0 0.0
    %512 = vmatprep.subr.mxu0 0.0
    %513 = vmatpush2.msra.mxu0 0.0
    %514 = vmatprep.subr.mxu0 0.0
    %515 = vmatpush2.msra.mxu0 0.0
    %516 = vmatprep.subr.mxu0 0.0
    %517 = vmatpush2.msra.mxu0 0.0
    %518 = vmatprep.subr.mxu0 0.0
    %519 = vmatpush2.msra.mxu0 0.0
    %520 = vmatprep.subr.mxu0 0.0
    %521 = vmatpush2.msra.mxu0 0.0
    %522 = vmatprep.subr.mxu0 0.0
    %523 = vmatpush2.msra.mxu0 0.0
    %524 = vmatprep.subr.mxu0 0.0
    %525 = vmatpush2.msra.mxu0 0.0
    %526 = vmatprep.subr.mxu0 0.0
    %527 = vmatpush2.msra.mxu0 0.0
    %528 = vmatprep.subr.mxu0 0.0
    %529 = vmatpush2.msra.mxu0 0.0
    %530 = vmatprep.subr.mxu0 0.0
    %531 = vmatpush2.msra.mxu0 0.0
    %532 = vmatprep.subr.mxu0 0.0
    %533 = vmatpush2.msra.mxu0 0.0
    %534 = vmatprep.subr.mxu0 0.0
    %535 = vmatpush2.msra.mxu0 0.0
    %536 = vmatprep.subr.mxu0 0.0
    %537 = vmatpush2.msra.mxu0 0.0
    %538 = vmatprep.subr.mxu0 0.0
    %539 = vmatpush2.msra.mxu0 0.0
    %540 = vmatprep.mubr.f32.mxu0 0.0
    %541 = vmatmul.mubr.f32.gmra.mxu0 %v474
    %v542 = vpop.f32.mrf.mxu0
    %v543 = vadd.f32 %v472, %v542
    %v544 = vpop.f32.mrf.mxu0
    %545 = vdwg.mxu0
    %546 = vst [vmem:[#allocation5] sm:$0xff] %v543
    %547 = vst [vmem:[%s4] sm:$0xff] %v467
    // Predicated region
    $region18: #{fwd.1} parent=1 // pred_check
      _
    $region19: #{fwd.1} parent=1 // pred_check_branch
      %549 = sbr.rel (0) target = $region21
    $region20: #{fwd.1} parent=1 // pred_region
      %s551 = ssub.s32 128, 128
      %552 = vsyncadd [#allocation4], %s551
      %s554 = sshll.u32 [#allocation5], 4
      %s555 = int_to_ptr.vmem [resolvable:$true] %s554
      %557 = dma.vmem_to_hbm [thread:$0]  %s555, 128, %s3, [#allocation4]
    $region21: #{fwd.1} parent=1 // pred_fallthru
      _
    // Predicated region
    $region22: #{fwd.1} parent=1 // pred_check
      _
    $region23: #{fwd.1} parent=1 // pred_check_branch
      %559 = sbr.rel (0) target = $region25
    $region24: #{fwd.1} parent=1 // pred_region
      _
    $region25: #{fwd.1} parent=1 // pred_fallthru
      _
    // Predicated region
    $region26: #{fwd.1} parent=1 // pred_check
      _
    $region27: #{fwd.1} parent=1 // pred_check_branch
      %561 = sbr.rel (0) target = $region29
    $region28: #{fwd.1} parent=1 // pred_region
      %562 = dma.done [#allocation4], 128
    $region29: #{fwd.1} parent=1 // pred_fallthru
      _
    // Predicated region
    $region30: #{fwd.1} parent=1 // pred_check
      _
    $region31: #{fwd.1} parent=1 // pred_check_branch
      %564 = sbr.rel (0) target = $region33
    $region32: #{fwd.1} parent=1 // pred_region
      _
    $region33: #{fwd.1} parent=1 // pred_fallthru
      _
    %565 = vsyncpa [#allocation3], 1
    %566 = vsyncpa [#allocation4], 1

</llo_original>
